<compile_context>
chip_gen: v6e
topology: v6e:2x2x1
jax: 0.10.0
libtpu: 0.0.40
codegen_flags: <defaults>
</compile_context>

<pallas_src>
import functools

import jax
import jax.numpy as jnp
from jax import lax
from jax.experimental import pallas as pl
from jax.experimental.pallas import tpu as pltpu


def _decode_chunk_kernel(T, xg_ref, h0_ref, c0_ref, w_hh_ref, w_out_ref,
                         b_out_ref, net_ref, lse_ref, h_ref, c_ref, hs_ref):
    """One grid step == one chunk of Tc decoded timesteps."""
    chunk = pl.program_id(0)
    Tc = xg_ref.shape[0]
    H = h0_ref.shape[-1]
    masked = (T % Tc) != 0          # trace-time bool: last chunk is ragged

    # Initialize the resident recurrent-state carriers on the first chunk.
    @pl.when(chunk == 0)
    def _():
        h_ref[...] = h0_ref[...]
        c_ref[...] = c0_ref[...]

    w_hh = w_hh_ref[...]            # (H, 4H) bf16, VMEM-resident

    def step(t, carry):
        h_prev, c_prev = carry      # (1, H) f32 each
        # Serial critical path: ONE (1,H)@(H,4H) matmul; the x-part of the
        # gate pre-activation was batched outside the recurrence.
        gates = xg_ref[pl.ds(t, 1), :] + jnp.dot(
            h_prev.astype(jnp.bfloat16), w_hh,
            preferred_element_type=jnp.float32)              # (1, 4H) f32

        # PyTorch LSTM gate order: input, forget, cell(g), output.
        # H is a multiple of 128 so these lane slices are vreg-aligned.
        i_g = jax.nn.sigmoid(gates[:, 0 * H:1 * H])
        f_g = jax.nn.sigmoid(gates[:, 1 * H:2 * H])
        g_g = jnp.tanh(gates[:, 2 * H:3 * H])
        o_g = jax.nn.sigmoid(gates[:, 3 * H:4 * H])

        c_new = f_g * c_prev + i_g * g_g
        h_new = o_g * jnp.tanh(c_new)

        if masked:                  # padded tail steps must not advance state
            valid = (chunk * Tc + t) < T
            h_new = jnp.where(valid, h_new, h_prev)
            c_new = jnp.where(valid, c_new, c_prev)

        hs_ref[pl.ds(t, 1), :] = h_new          # stage row for batched proj
        return h_new, c_new

    h_fin, c_fin = lax.fori_loop(0, Tc, step, (h_ref[...], c_ref[...]),
                                 unroll=True)
    h_ref[...] = h_fin
    c_ref[...] = c_fin

    # Deferred vocab projection + log-sum-exp, batched over the whole chunk
    # (M=Tc matmul; max/exp/sum on full 8-sublane vregs).
    net = jnp.dot(hs_ref[...].astype(jnp.bfloat16), w_out_ref[...],
                  preferred_element_type=jnp.float32) + b_out_ref[...]
    m = jnp.max(net, axis=-1, keepdims=True)
    lse = m + jnp.log(jnp.sum(jnp.exp(net - m), axis=-1, keepdims=True))
    net_ref[...] = net
    lse_ref[...] = lse


def decoder_rnn_decode(params, tokens, hidden, *, chunk=8):
    """Run T teacher-forced decode steps in one fused pallas_call.

    tokens : int32 (T,)
    hidden : (h0, c0), each (1, 1, H)
    returns: (log_probs (T, O), netinput (T, O), (hT, cT) each (1, 1, H))
    """
    H = params["w_hh_t"].shape[0]
    O = params["w_out_t"].shape[1]
    T = int(tokens.shape[0])

    Tc = chunk if T >= chunk else T          # small-T path: block == full array
    num_chunks = int(pl.cdiv(T, Tc))
    T_pad = num_chunks * Tc

    h0, c0 = hidden
    h0 = h0.reshape(1, H).astype(jnp.float32)
    c0 = c0.reshape(1, H).astype(jnp.float32)

    tokens = jnp.asarray(tokens, dtype=jnp.int32)
    if T_pad != T:
        tokens = jnp.pad(tokens, (0, T_pad - T))

    # ---- Phase 1 (batched, outside the recurrence) ----
    # Embedding gather for all tokens + input-gate projection as one M=T matmul.
    # Dropout on embedded is identity (eval-mode semantics).
    x_emb = jnp.take(params["embedding"], tokens, axis=0)            # (T_pad, H) bf16
    x_gates = (jnp.dot(x_emb, params["w_ih_t"],
                       preferred_element_type=jnp.float32)
               + params["b_gates"])                                   # (T_pad, 4H) f32

    # ---- Phase 2 (fused serial recurrence + per-chunk projection) ----
    kernel = functools.partial(_decode_chunk_kernel, T)

    def const2(shape):
        # Full-array block whose index never changes -> DMA'd once, resident.
        return pl.BlockSpec(shape, lambda i: (0, 0))

    in_specs = [
        pl.BlockSpec((Tc, 4 * H), lambda i: (i, 0)),   # per-chunk gate preacts
        const2((1, H)),                                # h0
        const2((1, H)),                                # c0
        const2((H, 4 * H)),                            # W_hh (resident, bf16)
        const2((H, O)),                                # W_out (resident, bf16)
        const2((1, O)),                                # b_out
    ]
    out_specs = (
        pl.BlockSpec((Tc, O), lambda i: (i, 0)),       # net logits, per chunk
        pl.BlockSpec((Tc, 1), lambda i: (i, 0)),       # log-sum-exp, per chunk
        const2((1, H)),                                # final h (state carrier)
        const2((1, H)),                                # final c (state carrier)
    )
    out_shapes = (
        jax.ShapeDtypeStruct((T_pad, O), jnp.float32),
        jax.ShapeDtypeStruct((T_pad, 1), jnp.float32),
        jax.ShapeDtypeStruct((1, H), jnp.float32),
        jax.ShapeDtypeStruct((1, H), jnp.float32),
    )
    scratch_shapes = [pltpu.VMEM((Tc, H), jnp.float32)]   # staged h rows

    # Generation-aware VMEM budget (leave headroom below physical capacity).
    weight_bytes = (params["w_hh_t"].size * 2 + params["w_out_t"].size * 2
                    + params["b_out"].size * 4)
    pipe_bytes = 2 * (Tc * 4 * H * 4) + 2 * (Tc * O * 4 + Tc * 4)
    misc_bytes = 8 * H * 4 + Tc * H * 4
    need = 2 * weight_bytes + pipe_bytes + misc_bytes + (4 << 20)
    try:
        cap = int(pltpu.get_tpu_info().vmem_capacity_bytes * 0.8)
    except Exception:  # conservative fallback (fits v7x's 64 MiB physical)
        cap = 48 * 1024 * 1024
    vmem_limit = min(max(need, 32 * 1024 * 1024), cap)

    cost = pl.CostEstimate(
        flops=int(2 * T_pad * (H * 4 * H + H * O)),
        transcendentals=int(T_pad * (6 * H + O)),
        bytes_accessed=int(weight_bytes + x_gates.size * 4
                           + T_pad * (O + 1) * 4 + 2 * H * 4),
    )

    net, lse, h1, c1 = pl.pallas_call(
        kernel,
        grid=(num_chunks,),
        in_specs=in_specs,
        out_specs=out_specs,
        out_shape=out_shapes,
        scratch_shapes=scratch_shapes,
        compiler_params=pltpu.CompilerParams(
            dimension_semantics=("arbitrary",),   # sequential recurrence
            vmem_limit_bytes=int(vmem_limit),
        ),
        cost_estimate=cost,
    )(x_gates, h0, c0, params["w_hh_t"], params["w_out_t"], params["b_out"])

    net = net[:T]
    logp = net - lse[:T]          # cheap fused broadcast-subtract in the caller
    return logp, net, (h1.reshape(1, 1, H), c1.reshape(1, 1, H))


def decoder_rnn_forward(params, token_id, hidden):
    """Matches DecoderRNN.forward(input, hidden): one token, one step."""
    tokens = jnp.asarray(token_id, dtype=jnp.int32).reshape((1,))
    logp, net, hidden_out = decoder_rnn_decode(params, tokens, hidden)
    return logp, hidden_out, net


def decoder_rnn_reference(params, tokens, hidden):
    """Pure-JAX reference with identical bf16 weights / f32 accumulation."""
    H = params["w_hh_t"].shape[0]
    h, c = hidden
    h = h.reshape(1, H).astype(jnp.float32)
    c = c.reshape(1, H).astype(jnp.float32)
    x_emb = jnp.take(params["embedding"], jnp.asarray(tokens, jnp.int32), axis=0)
    x_gates = jnp.dot(x_emb, params["w_ih_t"],
                      preferred_element_type=jnp.float32) + params["b_gates"]
    logps, nets = [], []
    for t in range(int(tokens.shape[0])):
        gates = x_gates[t:t + 1] + jnp.dot(h.astype(jnp.bfloat16),
                                           params["w_hh_t"],
                                           preferred_element_type=jnp.float32)
        i_g = jax.nn.sigmoid(gates[:, 0 * H:1 * H])
        f_g = jax.nn.sigmoid(gates[:, 1 * H:2 * H])
        g_g = jnp.tanh(gates[:, 2 * H:3 * H])
        o_g = jax.nn.sigmoid(gates[:, 3 * H:4 * H])
        c = f_g * c + i_g * g_g
        h = o_g * jnp.tanh(c)
        net = jnp.dot(h.astype(jnp.bfloat16), params["w_out_t"],
                      preferred_element_type=jnp.float32) + params["b_out"]
        logps.append(jax.nn.log_softmax(net, axis=-1))
        nets.append(net)
    return (jnp.concatenate(logps, axis=0), jnp.concatenate(nets, axis=0),
            (h.reshape(1, 1, H), c.reshape(1, 1, H)))


def make_params(key, hidden_size, output_size):
    ks = jax.random.split(key, 6)
    scale = 1.0 / jnp.sqrt(jnp.float32(hidden_size))
    return dict(
        # nn.Embedding(output_size, hidden_size), bf16
        embedding=(jax.random.normal(ks[0], (output_size, hidden_size),
                                     jnp.float32) * 0.1).astype(jnp.bfloat16),
        # nn.LSTM(H, H): weight_ih_l0 (4H,H) / weight_hh_l0 (4H,H), stored
        # pre-transposed (H, 4H) in bf16.
        w_ih_t=(jax.random.normal(ks[1], (hidden_size, 4 * hidden_size),
                                  jnp.float32) * scale).astype(jnp.bfloat16),
        w_hh_t=(jax.random.normal(ks[2], (hidden_size, 4 * hidden_size),
                                  jnp.float32) * scale).astype(jnp.bfloat16),
        # NOTE: when porting real PyTorch weights this must be b_ih_l0 + b_hh_l0.
        b_gates=jax.random.normal(ks[3], (1, 4 * hidden_size), jnp.float32) * scale,
        # nn.Linear(H, output_size): weight (O, H) — stored pre-transposed (bf16)
        w_out_t=(jax.random.normal(ks[4], (hidden_size, output_size),
                                   jnp.float32) * scale).astype(jnp.bfloat16),
        b_out=jax.random.normal(ks[5], (1, output_size), jnp.float32) * scale,
    )


if __name__ == "__main__":
    HIDDEN = 128    # multiple of 128 keeps gate slices lane-aligned
    OUTPUT = 256    # lane-dense output projection
    T = 8           # fused decode length (one full chunk)

    key = jax.random.PRNGKey(0)
    k_params, k_h, k_c, k_tok = jax.random.split(key, 4)

    params = make_params(k_params, HIDDEN, OUTPUT)
    h0 = jax.random.normal(k_h, (1, 1, HIDDEN), jnp.float32)   # (n_layers, batch, H)
    c0 = jax.random.normal(k_c, (1, 1, HIDDEN), jnp.float32)

    # --- single-step forward: exactly the module's forward(input, hidden) ---
    token = jnp.array(5, dtype=jnp.int32)
    log_probs, (h1, c1), netinput = decoder_rnn_forward(params, token, (h0, c0))
    jax.block_until_ready((log_probs, h1, c1, netinput))
    assert log_probs.shape == (1, OUTPUT) and netinput.shape == (1, OUTPUT)
    assert h1.shape == (1, 1, HIDDEN) and c1.shape == (1, 1, HIDDEN)

    # --- fused multi-step decode: T forward steps, one chunk per grid step ---
    tokens = jax.random.randint(k_tok, (T,), 0, OUTPUT, dtype=jnp.int32)
    logp_seq, net_seq, (hT, cT) = decoder_rnn_decode(params, tokens, (h0, c0))
    jax.block_until_ready((logp_seq, net_seq, hT, cT))
    assert logp_seq.shape == (T, OUTPUT) and net_seq.shape == (T, OUTPUT)

    ref_logp, ref_net, (ref_h, ref_c) = decoder_rnn_reference(params, tokens, (h0, c0))
    assert jnp.allclose(logp_seq, ref_logp, atol=1e-2, rtol=1e-2)
    assert jnp.allclose(net_seq, ref_net, atol=1e-2, rtol=1e-2)
    assert jnp.allclose(hT, ref_h, atol=1e-2, rtol=1e-2)
    assert jnp.allclose(cT, ref_c, atol=1e-2, rtol=1e-2)
    assert bool(jnp.allclose(jnp.sum(jnp.exp(logp_seq), axis=-1), 1.0, atol=1e-3))

    # --- ragged length: exercises padding + masked tail steps in last chunk ---
    T2 = 11
    tokens2 = jax.random.randint(jax.random.PRNGKey(7), (T2,), 0, OUTPUT,
                                 dtype=jnp.int32)
    logp2, net2, (h2, c2) = decoder_rnn_decode(params, tokens2, (h0, c0))
    jax.block_until_ready((logp2, net2, h2, c2))
    r_logp2, r_net2, (r_h2, r_c2) = decoder_rnn_reference(params, tokens2, (h0, c0))
    assert logp2.shape == (T2, OUTPUT) and net2.shape == (T2, OUTPUT)
    assert jnp.allclose(logp2, r_logp2, atol=1e-2, rtol=1e-2)
    assert jnp.allclose(net2, r_net2, atol=1e-2, rtol=1e-2)
    assert jnp.allclose(h2, r_h2, atol=1e-2, rtol=1e-2)
    assert jnp.allclose(c2, r_c2, atol=1e-2, rtol=1e-2)

    print("KERNEL_OK")
</pallas_src>

<mosaic_0001>
module attributes {stable_mosaic.version = 11 : i64} {
  func.func @_decode_chunk_kernel(%arg0: i32, %arg1: memref<1x512xf32, #tpu.memory_space<vmem>>, %arg2: memref<1x128xf32, #tpu.memory_space<vmem>>, %arg3: memref<1x128xf32, #tpu.memory_space<vmem>>, %arg4: memref<128x512xbf16, #tpu.memory_space<vmem>>, %arg5: memref<128x256xbf16, #tpu.memory_space<vmem>>, %arg6: memref<1x256xf32, #tpu.memory_space<vmem>>, %arg7: memref<1x256xf32, #tpu.memory_space<vmem>>, %arg8: memref<1x1xf32, #tpu.memory_space<vmem>>, %arg9: memref<1x128xf32, #tpu.memory_space<vmem>>, %arg10: memref<1x128xf32, #tpu.memory_space<vmem>>, %arg11: memref<1x128xf32, #tpu.memory_space<vmem>>) attributes {dimension_semantics = [#tpu.dimension_semantics<arbitrary>], iteration_bounds = array<i64: 1>, scalar_prefetch = 0 : i64, scratch_operands = 1 : i64, tpu.core_type = #tpu.core_type<tc>, window_params = [{transform_indices = @transform_0, window_bounds = array<i64: 1, 512>}, {pipeline_mode = #tpu.pipeline_mode<synchronous>, transform_indices = @transform_1, window_bounds = array<i64: 1, 128>}, {pipeline_mode = #tpu.pipeline_mode<synchronous>, transform_indices = @transform_2, window_bounds = array<i64: 1, 128>}, {pipeline_mode = #tpu.pipeline_mode<synchronous>, transform_indices = @transform_3, window_bounds = array<i64: 128, 512>}, {pipeline_mode = #tpu.pipeline_mode<synchronous>, transform_indices = @transform_4, window_bounds = array<i64: 128, 256>}, {pipeline_mode = #tpu.pipeline_mode<synchronous>, transform_indices = @transform_5, window_bounds = array<i64: 1, 256>}, {transform_indices = @transform_6, window_bounds = array<i64: 1, 256>}, {transform_indices = @transform_7, window_bounds = array<i64: 1, 1>}, {pipeline_mode = #tpu.pipeline_mode<synchronous>, transform_indices = @transform_8, window_bounds = array<i64: 1, 128>}, {pipeline_mode = #tpu.pipeline_mode<synchronous>, transform_indices = @transform_9, window_bounds = array<i64: 1, 128>}]} {
    %c0_i32 = arith.constant 0 : i32
    %0 = arith.cmpi eq, %arg0, %c0_i32 : i32
    %1 = arith.extui %0 : i1 to i32
    %c0_i32_0 = arith.constant 0 : i32
    %2 = arith.cmpi ne, %1, %c0_i32_0 : i32
    scf.if %2 {
      %c0_29 = arith.constant 0 : index
      %c0_30 = arith.constant 0 : index
      %57 = vector.load %arg2[%c0_29, %c0_30] : memref<1x128xf32, #tpu.memory_space<vmem>>, vector<1x128xf32>
      %c0_31 = arith.constant 0 : index
      %c0_32 = arith.constant 0 : index
      %58 = vector.load %arg9[%c0_31, %c0_32] : memref<1x128xf32, #tpu.memory_space<vmem>>, vector<1x128xf32>
      tpu.vector_store %arg9[%c0_31, %c0_32], %57 {strides = array<i32>} : memref<1x128xf32, #tpu.memory_space<vmem>>, vector<1x128xf32>,
      %c0_33 = arith.constant 0 : index
      %c0_34 = arith.constant 0 : index
      %59 = vector.load %arg3[%c0_33, %c0_34] : memref<1x128xf32, #tpu.memory_space<vmem>>, vector<1x128xf32>
      %c0_35 = arith.constant 0 : index
      %c0_36 = arith.constant 0 : index
      %60 = vector.load %arg10[%c0_35, %c0_36] : memref<1x128xf32, #tpu.memory_space<vmem>>, vector<1x128xf32>
      tpu.vector_store %arg10[%c0_35, %c0_36], %59 {strides = array<i32>} : memref<1x128xf32, #tpu.memory_space<vmem>>, vector<1x128xf32>,
    } else {
    }
    %c0 = arith.constant 0 : index
    %c0_1 = arith.constant 0 : index
    %3 = vector.load %arg4[%c0, %c0_1] : memref<128x512xbf16, #tpu.memory_space<vmem>>, vector<128x512xbf16>
    %c0_2 = arith.constant 0 : index
    %c0_3 = arith.constant 0 : index
    %4 = vector.load %arg9[%c0_2, %c0_3] : memref<1x128xf32, #tpu.memory_space<vmem>>, vector<1x128xf32>
    %c0_4 = arith.constant 0 : index
    %c0_5 = arith.constant 0 : index
    %5 = vector.load %arg10[%c0_4, %c0_5] : memref<1x128xf32, #tpu.memory_space<vmem>>, vector<1x128xf32>
    %c0_i32_6 = arith.constant 0 : i32
    %6 = arith.index_cast %c0_i32_6 : i32 to index
    %c0_7 = arith.constant 0 : index
    %7 = vector.load %arg1[%6, %c0_7] : memref<1x512xf32, #tpu.memory_space<vmem>>, vector<1x512xf32>
    %8 = arith.truncf %4 : vector<1x128xf32> to vector<1x128xbf16>
    %cst = arith.constant dense<0.000000e+00> : vector<1x512xf32>
    %9 = tpu.matmul %8, %3, %cst {dimension_numbers = #tpu.dot_dimension_numbers<[1], [0], [0], [1], [0, 0, 1, 1], [], []>} : vector<1x128xbf16>, vector<128x512xbf16>, vector<1x512xf32> -> vector<1x512xf32>
    %10 = arith.addf %7, %9 : vector<1x512xf32>
    %11 = vector.extract_strided_slice %10 {offsets = [0, 0], sizes = [1, 128], strides = [1, 1]} : vector<1x512xf32> to vector<1x128xf32>
    %12 = arith.negf %11 : vector<1x128xf32>
    %13 = math.exp %12 : vector<1x128xf32>
    %cst_8 = arith.constant 1.000000e+00 : f32
    %14 = vector.broadcast %cst_8 : f32 to vector<1x128xf32>
    %15 = arith.addf %14, %13 : vector<1x128xf32>
    %16 = arith.divf %14, %15 : vector<1x128xf32>
    %17 = vector.extract_strided_slice %10 {offsets = [0, 128], sizes = [1, 128], strides = [1, 1]} : vector<1x512xf32> to vector<1x128xf32>
    %18 = arith.negf %17 : vector<1x128xf32>
    %19 = math.exp %18 : vector<1x128xf32>
    %cst_9 = arith.constant 1.000000e+00 : f32
    %20 = vector.broadcast %cst_9 : f32 to vector<1x128xf32>
    %21 = arith.addf %20, %19 : vector<1x128xf32>
    %22 = arith.divf %20, %21 : vector<1x128xf32>
    %23 = vector.extract_strided_slice %10 {offsets = [0, 256], sizes = [1, 128], strides = [1, 1]} : vector<1x512xf32> to vector<1x128xf32>
    %24 = math.tanh %23 : vector<1x128xf32>
    %25 = vector.extract_strided_slice %10 {offsets = [0, 384], sizes = [1, 128], strides = [1, 1]} : vector<1x512xf32> to vector<1x128xf32>
    %26 = arith.negf %25 : vector<1x128xf32>
    %27 = math.exp %26 : vector<1x128xf32>
    %cst_10 = arith.constant 1.000000e+00 : f32
    %28 = vector.broadcast %cst_10 : f32 to vector<1x128xf32>
    %29 = arith.addf %28, %27 : vector<1x128xf32>
    %30 = arith.divf %28, %29 : vector<1x128xf32>
    %31 = arith.mulf %22, %5 : vector<1x128xf32>
    %32 = arith.mulf %16, %24 : vector<1x128xf32>
    %33 = arith.addf %31, %32 : vector<1x128xf32>
    %34 = math.tanh %33 : vector<1x128xf32>
    %35 = arith.mulf %30, %34 : vector<1x128xf32>
    %36 = arith.index_cast %c0_i32_6 : i32 to index
    %c0_11 = arith.constant 0 : index
    %37 = vector.load %arg11[%36, %c0_11] : memref<1x128xf32, #tpu.memory_space<vmem>>, vector<1x128xf32>
    tpu.vector_store %arg11[%36, %c0_11], %35 {strides = array<i32>} : memref<1x128xf32, #tpu.memory_space<vmem>>, vector<1x128xf32>,
    %c1_i32 = arith.constant 1 : i32
    %c0_12 = arith.constant 0 : index
    %c0_13 = arith.constant 0 : index
    %38 = vector.load %arg9[%c0_12, %c0_13] : memref<1x128xf32, #tpu.memory_space<vmem>>, vector<1x128xf32>
    tpu.vector_store %arg9[%c0_12, %c0_13], %35 {strides = array<i32>} : memref<1x128xf32, #tpu.memory_space<vmem>>, vector<1x128xf32>,
    %c0_14 = arith.constant 0 : index
    %c0_15 = arith.constant 0 : index
    %39 = vector.load %arg10[%c0_14, %c0_15] : memref<1x128xf32, #tpu.memory_space<vmem>>, vector<1x128xf32>
    tpu.vector_store %arg10[%c0_14, %c0_15], %33 {strides = array<i32>} : memref<1x128xf32, #tpu.memory_space<vmem>>, vector<1x128xf32>,
    %c0_16 = arith.constant 0 : index
    %c0_17 = arith.constant 0 : index
    %40 = vector.load %arg11[%c0_16, %c0_17] : memref<1x128xf32, #tpu.memory_space<vmem>>, vector<1x128xf32>
    %41 = arith.truncf %40 : vector<1x128xf32> to vector<1x128xbf16>
    %c0_18 = arith.constant 0 : index
    %c0_19 = arith.constant 0 : index
    %42 = vector.load %arg5[%c0_18, %c0_19] : memref<128x256xbf16, #tpu.memory_space<vmem>>, vector<128x256xbf16>
    %cst_20 = arith.constant dense<0.000000e+00> : vector<1x256xf32>
    %43 = tpu.matmul %41, %42, %cst_20 {dimension_numbers = #tpu.dot_dimension_numbers<[1], [0], [0], [1], [0, 0, 1, 1], [], []>} : vector<1x128xbf16>, vector<128x256xbf16>, vector<1x256xf32> -> vector<1x256xf32>
    %c0_21 = arith.constant 0 : index
    %c0_22 = arith.constant 0 : index
    %44 = vector.load %arg6[%c0_21, %c0_22] : memref<1x256xf32, #tpu.memory_space<vmem>>, vector<1x256xf32>
    %45 = arith.addf %43, %44 : vector<1x256xf32>
    %cst_23 = arith.constant dense<0xFF800000> : vector<1xf32>
    %46 = vector.multi_reduction <maximumf>, %45, %cst_23 [1] : vector<1x256xf32> to vector<1xf32>
    %47 = vector.shape_cast %46 : vector<1xf32> to vector<1x1xf32>
    %48 = vector.broadcast %47 : vector<1x1xf32> to vector<1x256xf32>
    %49 = arith.subf %45, %48 : vector<1x256xf32>
    %50 = math.exp %49 : vector<1x256xf32>
    %cst_24 = arith.constant dense<0.000000e+00> : vector<1xf32>
    %51 = vector.multi_reduction <add>, %50, %cst_24 [1] : vector<1x256xf32> to vector<1xf32>
    %52 = vector.shape_cast %51 : vector<1xf32> to vector<1x1xf32>
    %53 = math.log %52 : vector<1x1xf32>
    %54 = arith.addf %47, %53 : vector<1x1xf32>
    %c0_25 = arith.constant 0 : index
    %c0_26 = arith.constant 0 : index
    %55 = vector.load %arg7[%c0_25, %c0_26] : memref<1x256xf32, #tpu.memory_space<vmem>>, vector<1x256xf32>
    tpu.vector_store %arg7[%c0_25, %c0_26], %45 {strides = array<i32>} : memref<1x256xf32, #tpu.memory_space<vmem>>, vector<1x256xf32>,
    %c0_27 = arith.constant 0 : index
    %c0_28 = arith.constant 0 : index
    %56 = vector.load %arg8[%c0_27, %c0_28] : memref<1x1xf32, #tpu.memory_space<vmem>>, vector<1x1xf32>
    tpu.vector_store %arg8[%c0_27, %c0_28], %54 {strides = array<i32>} : memref<1x1xf32, #tpu.memory_space<vmem>>, vector<1x1xf32>,
    return
  }
  func.func @transform_0(%arg0: i32) -> (i32, i32) {
    %c0_i32 = arith.constant 0 : i32
    %c0_i32_0 = arith.constant 0 : i32
    return %arg0, %c0_i32 : i32, i32
  }
  func.func @transform_1(%arg0: i32) -> (i32, i32) {
    %c0_i32 = arith.constant 0 : i32
    %c0_i32_0 = arith.constant 0 : i32
    %c0_i32_1 = arith.constant 0 : i32
    return %c0_i32, %c0_i32_0 : i32, i32
  }
  func.func @transform_2(%arg0: i32) -> (i32, i32) {
    %c0_i32 = arith.constant 0 : i32
    %c0_i32_0 = arith.constant 0 : i32
    %c0_i32_1 = arith.constant 0 : i32
    return %c0_i32, %c0_i32_0 : i32, i32
  }
  func.func @transform_3(%arg0: i32) -> (i32, i32) {
    %c0_i32 = arith.constant 0 : i32
    %c0_i32_0 = arith.constant 0 : i32
    %c0_i32_1 = arith.constant 0 : i32
    return %c0_i32, %c0_i32_0 : i32, i32
  }
  func.func @transform_4(%arg0: i32) -> (i32, i32) {
    %c0_i32 = arith.constant 0 : i32
    %c0_i32_0 = arith.constant 0 : i32
    %c0_i32_1 = arith.constant 0 : i32
    return %c0_i32, %c0_i32_0 : i32, i32
  }
  func.func @transform_5(%arg0: i32) -> (i32, i32) {
    %c0_i32 = arith.constant 0 : i32
    %c0_i32_0 = arith.constant 0 : i32
    %c0_i32_1 = arith.constant 0 : i32
    return %c0_i32, %c0_i32_0 : i32, i32
  }
  func.func @transform_6(%arg0: i32) -> (i32, i32) {
    %c0_i32 = arith.constant 0 : i32
    %c0_i32_0 = arith.constant 0 : i32
    return %arg0, %c0_i32 : i32, i32
  }
  func.func @transform_7(%arg0: i32) -> (i32, i32) {
    %c0_i32 = arith.constant 0 : i32
    %c0_i32_0 = arith.constant 0 : i32
    return %arg0, %c0_i32 : i32, i32
  }
  func.func @transform_8(%arg0: i32) -> (i32, i32) {
    %c0_i32 = arith.constant 0 : i32
    %c0_i32_0 = arith.constant 0 : i32
    %c0_i32_1 = arith.constant 0 : i32
    return %c0_i32, %c0_i32_0 : i32, i32
  }
  func.func @transform_9(%arg0: i32) -> (i32, i32) {
    %c0_i32 = arith.constant 0 : i32
    %c0_i32_0 = arith.constant 0 : i32
    %c0_i32_1 = arith.constant 0 : i32
    return %c0_i32, %c0_i32_0 : i32, i32
  }
}

</mosaic_0001>

<llo_original>
// kernel: tpu_custom_call.1
$region0: #{tpu_custom_call.1}
  #allocation0 [shape = 'u32[]', space=smem, size = 0x4, offset = 0x4, fixed_abs, tag = 'smem constant byte address 0x4 - core index']
  #allocation1 [shape = 'u32[144,128]{1,0:T(1,128)}', space=vmem, size = 0x12000, scoped, tag = 'internal scratch']
  #allocation2 [shape = 'f32[1,128]{1,0:T(1,128)}', space=vmem, size = 0x200, scoped, tag = 'scratch operand']
  %s0 = inlined_call_operand.hbm [shape: f32[1,512], index: 0, kind: input, shape index: {}]
  %s1 = inlined_call_operand.vmem [shape: f32[1,128], index: 1, kind: input, shape index: {}]
  %s2 = inlined_call_operand.hbm [shape: f32[1,128], index: 2, kind: input, shape index: {}]
  %s3 = inlined_call_operand.hbm [shape: bf16[128,512], index: 3, kind: input, shape index: {}]
  %s4 = inlined_call_operand.hbm [shape: bf16[128,256], index: 4, kind: input, shape index: {}]
  %s5 = inlined_call_operand.vmem [shape: f32[1,256], index: 5, kind: input, shape index: {}]
  %s6 = inlined_call_operand.hbm [shape: f32[1,256], index: 6, kind: output, shape index: {0}]
  %s7 = inlined_call_operand.hbm [shape: f32[1,1], index: 7, kind: output, shape index: {1}]
  %s8 = inlined_call_operand.hbm [shape: f32[1,128], index: 8, kind: output, shape index: {2}]
  %s9 = inlined_call_operand.hbm [shape: f32[1,128], index: 9, kind: output, shape index: {3}]
  %10 = xla_tuple %s6, %s7, %s8, %s9
  %s11 = sld [smem:[#allocation0]]
  $region78: #{tpu_custom_call.1} parent=0
    _
  %s13 = ssub.s32 1, %s11
  %s14 = scalar_select 0, %s13, %s11
  $region1: #{tpu_custom_call.1} parent=0
    #allocation3 [shape = 'u8[2048]{0}', space=vmem, size = 0x800, scoped, tag = 'input window, operand 0, single buffered']
    #allocation4 [shape = 's32[1]{0}', space=sflag, size = 0x4, scoped, tag = 'scoped memory for tpu_custom_call.1']
    #allocation5 [shape = 's32[1]{0}', space=sflag, size = 0x4, scoped, tag = 'scoped memory for tpu_custom_call.1']
    #allocation6 [shape = 'u8[512]{0}', space=vmem, size = 0x400, scoped, tag = 'input window, operand 2, single buffered']
    #allocation7 [shape = 's32[1]{0}', space=sflag, size = 0x4, scoped, tag = 'scoped memory for tpu_custom_call.1']
    #allocation8 [shape = 'u8[131072]{0}', space=vmem, size = 0x20000, scoped, tag = 'input window, operand 3, single buffered']
    #allocation9 [shape = 'u8[65536]{0}', space=vmem, size = 0x10000, scoped, tag = 'input window, operand 4, single buffered']
    #allocation10 [shape = 's32[1]{0}', space=sflag, size = 0x4, scoped, tag = 'scoped memory for tpu_custom_call.1']
    #allocation11 [shape = 'u8[1024]{0}', space=vmem, size = 0x400, scoped, tag = 'output window, operand 0, single buffered']
    #allocation12 [shape = 'u8[512]{0}', space=vmem, size = 0x400, scoped, tag = 'output window, operand 1, single buffered']
    #allocation13 [shape = 's32[1]{0}', space=sflag, size = 0x4, scoped, tag = 'scoped memory for tpu_custom_call.1']
    #allocation14 [shape = 'u8[512]{0}', space=vmem, size = 0x400, scoped, tag = 'output window, operand 2, single buffered']
    #allocation15 [shape = 'u8[512]{0}', space=vmem, size = 0x400, scoped, tag = 'output window, operand 3, single buffered']
    #allocation16 [shape = 's32[1]{0}', space=sflag, size = 0x4, scoped, tag = 'scoped memory for tpu_custom_call.1']
    %15 = vsyncpa [#allocation4], 0
    %16 = vsyncpa [#allocation7], 0
    %17 = vsyncpa [#allocation10], 0
    %18 = vsyncpa [#allocation5], 0
    %19 = vsyncpa [#allocation13], 0
    %20 = vsyncpa [#allocation16], 0
    // Predicated region
    $region2: #{tpu_custom_call.1} parent=1 // pred_check
      _
    $region3: #{tpu_custom_call.1} parent=1 // pred_check_branch
      %22 = sbr.rel (0) target = $region5
    $region4: #{tpu_custom_call.1} parent=1 // pred_region
      %s24 = ssub.s32 64, 64
      %25 = vsyncadd [#allocation4], %s24
      %s27 = sshll.u32 [#allocation3], 4
      %s28 = int_to_ptr.vmem [resolvable:$true] %s27
      %30 = dma.hbm_to_vmem [thread:$0]  %s0, 64, %s28, [#allocation4]
    $region5: #{tpu_custom_call.1} parent=1 // pred_fallthru
      _
    // Predicated region
    $region6: #{tpu_custom_call.1} parent=1 // pred_check
      _
    $region7: #{tpu_custom_call.1} parent=1 // pred_check_branch
      %32 = sbr.rel (0) target = $region9
    $region8: #{tpu_custom_call.1} parent=1 // pred_region
      _
    $region9: #{tpu_custom_call.1} parent=1 // pred_fallthru
      _
    // Predicated region
    $region10: #{tpu_custom_call.1} parent=1 // pred_check
      _
    $region11: #{tpu_custom_call.1} parent=1 // pred_check_branch
      %34 = sbr.rel (0) target = $region13
    $region12: #{tpu_custom_call.1} parent=1 // pred_region
      %s36 = ssub.s32 16, 16
      %37 = vsyncadd [#allocation7], %s36
      %s39 = sshll.u32 [#allocation6], 4
      %s40 = int_to_ptr.vmem [resolvable:$true] %s39
      %42 = dma.hbm_to_vmem [thread:$0]  %s2, 16, %s40, [#allocation7]
    $region13: #{tpu_custom_call.1} parent=1 // pred_fallthru
      _
    // Predicated region
    $region14: #{tpu_custom_call.1} parent=1 // pred_check
      _
    $region15: #{tpu_custom_call.1} parent=1 // pred_check_branch
      %44 = sbr.rel (0) target = $region17
    $region16: #{tpu_custom_call.1} parent=1 // pred_region
      %s46 = ssub.s32 4096, 4096
      %47 = vsyncadd [#allocation7], %s46
      %s48 = sshll.u32 [#allocation8], 4
      %s49 = int_to_ptr.vmem [resolvable:$true] %s48
      %54 = dma.hbm_to_vmem [thread:$0]  %s3, 4096, %s49, [#allocation7], 256, 256, 16
    $region17: #{tpu_custom_call.1} parent=1 // pred_fallthru
      _
    // Predicated region
    $region18: #{tpu_custom_call.1} parent=1 // pred_check
      _
    $region19: #{tpu_custom_call.1} parent=1 // pred_check_branch
      %56 = sbr.rel (0) target = $region21
    $region20: #{tpu_custom_call.1} parent=1 // pred_region
      %s58 = ssub.s32 2048, 2048
      %59 = vsyncadd [#allocation10], %s58
      %s60 = sshll.u32 [#allocation9], 4
      %s61 = int_to_ptr.vmem [resolvable:$true] %s60
      %66 = dma.hbm_to_vmem [thread:$0]  %s4, 2048, %s61, [#allocation10], 128, 128, 8
    $region21: #{tpu_custom_call.1} parent=1 // pred_fallthru
      _
    // Predicated region
    $region22: #{tpu_custom_call.1} parent=1 // pred_check
      _
    $region23: #{tpu_custom_call.1} parent=1 // pred_check_branch
      %68 = sbr.rel (0) target = $region25
    $region24: #{tpu_custom_call.1} parent=1 // pred_region
      _
    $region25: #{tpu_custom_call.1} parent=1 // pred_fallthru
      _
    // Predicated region
    $region26: #{tpu_custom_call.1} parent=1 // pred_check
      _
    $region27: #{tpu_custom_call.1} parent=1 // pred_check_branch
      %70 = sbr.rel (0) target = $region29
    $region28: #{tpu_custom_call.1} parent=1 // pred_region
      %71 = dma.done [#allocation4], 64
    $region29: #{tpu_custom_call.1} parent=1 // pred_fallthru
      _
    // Predicated region
    $region30: #{tpu_custom_call.1} parent=1 // pred_check
      _
    $region31: #{tpu_custom_call.1} parent=1 // pred_check_branch
      %73 = sbr.rel (0) target = $region33
    $region32: #{tpu_custom_call.1} parent=1 // pred_region
      %74 = dma.done [#allocation7], 16
    $region33: #{tpu_custom_call.1} parent=1 // pred_fallthru
      _
    // Predicated region
    $region34: #{tpu_custom_call.1} parent=1 // pred_check
      _
    $region35: #{tpu_custom_call.1} parent=1 // pred_check_branch
      %76 = sbr.rel (0) target = $region37
    $region36: #{tpu_custom_call.1} parent=1 // pred_region
      %77 = dma.done [#allocation7], 4096
    $region37: #{tpu_custom_call.1} parent=1 // pred_fallthru
      _
    // Predicated region
    $region38: #{tpu_custom_call.1} parent=1 // pred_check
      _
    $region39: #{tpu_custom_call.1} parent=1 // pred_check_branch
      %79 = sbr.rel (0) target = $region41
    $region40: #{tpu_custom_call.1} parent=1 // pred_region
      %80 = dma.done [#allocation10], 2048
    $region41: #{tpu_custom_call.1} parent=1 // pred_fallthru
      _
    %p82 = scmp.eq.s32.totalorder 0, 0
    // Predicated region
    $region42: #{tpu_custom_call.1} parent=1 // pred_check
      %p83 = pneg %p82
    $region43: #{tpu_custom_call.1} parent=1 // pred_check_branch
      %85 = sbr.rel (%p83) target = $region45
    $region44: #{tpu_custom_call.1} parent=1 // pred_region
      %v86 = vld [vmem:[%s1] sm:$0x1]
      %87 = vst [vmem:[#allocation14] sm:$0x1] %v86
      %v88 = vld [vmem:[#allocation6] sm:$0x1]
      %89 = vst [vmem:[#allocation15] sm:$0x1] %v88
    $region45: #{tpu_custom_call.1} parent=1 // pred_fallthru
      _
    %v90 = vld [vmem:[#allocation8] sm:$0xff]
    %v91 = vld [vmem:[#allocation8 + $0x8] sm:$0xff]
    %v92 = vld [vmem:[#allocation8 + $0x10] sm:$0xff]
    %v93 = vld [vmem:[#allocation8 + $0x18] sm:$0xff]
    %v94 = vld [vmem:[#allocation8 + $0x20] sm:$0xff]
    %v95 = vld [vmem:[#allocation8 + $0x28] sm:$0xff]
    %v96 = vld [vmem:[#allocation8 + $0x30] sm:$0xff]
    %v97 = vld [vmem:[#allocation8 + $0x38] sm:$0xff]
    %v98 = vld [vmem:[#allocation8 + $0x40] sm:$0xff]
    %v99 = vld [vmem:[#allocation8 + $0x48] sm:$0xff]
    %v100 = vld [vmem:[#allocation8 + $0x50] sm:$0xff]
    %v101 = vld [vmem:[#allocation8 + $0x58] sm:$0xff]
    %v102 = vld [vmem:[#allocation8 + $0x60] sm:$0xff]
    %v103 = vld [vmem:[#allocation8 + $0x68] sm:$0xff]
    %v104 = vld [vmem:[#allocation8 + $0x70] sm:$0xff]
    %v105 = vld [vmem:[#allocation8 + $0x78] sm:$0xff]
    %v106 = vld [vmem:[#allocation8 + $0x80] sm:$0xff]
    %v107 = vld [vmem:[#allocation8 + $0x88] sm:$0xff]
    %v108 = vld [vmem:[#allocation8 + $0x90] sm:$0xff]
    %v109 = vld [vmem:[#allocation8 + $0x98] sm:$0xff]
    %v110 = vld [vmem:[#allocation8 + $0xa0] sm:$0xff]
    %v111 = vld [vmem:[#allocation8 + $0xa8] sm:$0xff]
    %v112 = vld [vmem:[#allocation8 + $0xb0] sm:$0xff]
    %v113 = vld [vmem:[#allocation8 + $0xb8] sm:$0xff]
    %v114 = vld [vmem:[#allocation8 + $0xc0] sm:$0xff]
    %v115 = vld [vmem:[#allocation8 + $0xc8] sm:$0xff]
    %v116 = vld [vmem:[#allocation8 + $0xd0] sm:$0xff]
    %v117 = vld [vmem:[#allocation8 + $0xd8] sm:$0xff]
    %v118 = vld [vmem:[#allocation8 + $0xe0] sm:$0xff]
    %v119 = vld [vmem:[#allocation8 + $0xe8] sm:$0xff]
    %v120 = vld [vmem:[#allocation8 + $0xf0] sm:$0xff]
    %v121 = vld [vmem:[#allocation8 + $0xf8] sm:$0xff]
    %v122 = vld [vmem:[#allocation14] sm:$0x1]
    %v123 = vld [vmem:[#allocation15] sm:$0x1]
    %v124 = vld [vmem:[#allocation3] sm:$0xf]
    %v125 = vpack.c.bf16 %v122, %v122
    %v158 = vunpack.c.l.b16 %v90
    %v159 = vunpack.c.h.b16 %v90
    %v160 = vunpack.c.l.b16 %v91
    %v161 = vunpack.c.h.b16 %v91
    %v162 = vunpack.c.l.b16 %v92
    %v163 = vunpack.c.h.b16 %v92
    %v164 = vunpack.c.l.b16 %v93
    %v165 = vunpack.c.h.b16 %v93
    %v166 = vunpack.c.l.b16 %v94
    %v167 = vunpack.c.h.b16 %v94
    %v168 = vunpack.c.l.b16 %v95
    %v169 = vunpack.c.h.b16 %v95
    %v170 = vunpack.c.l.b16 %v96
    %v171 = vunpack.c.h.b16 %v96
    %v172 = vunpack.c.l.b16 %v97
    %v173 = vunpack.c.h.b16 %v97
    %v174 = vunpack.c.l.b16 %v98
    %v175 = vunpack.c.h.b16 %v98
    %v176 = vunpack.c.l.b16 %v99
    %v177 = vunpack.c.h.b16 %v99
    %v178 = vunpack.c.l.b16 %v100
    %v179 = vunpack.c.h.b16 %v100
    %v180 = vunpack.c.l.b16 %v101
    %v181 = vunpack.c.h.b16 %v101
    %v182 = vunpack.c.l.b16 %v102
    %v183 = vunpack.c.h.b16 %v102
    %v184 = vunpack.c.l.b16 %v103
    %v185 = vunpack.c.h.b16 %v103
    %v186 = vunpack.c.l.b16 %v104
    %v187 = vunpack.c.h.b16 %v104
    %v188 = vunpack.c.l.b16 %v105
    %v189 = vunpack.c.h.b16 %v105
    %v190 = vunpack.c.l.b16 %v106
    %v191 = vunpack.c.h.b16 %v106
    %v192 = vunpack.c.l.b16 %v107
    %v193 = vunpack.c.h.b16 %v107
    %v194 = vunpack.c.l.b16 %v108
    %v195 = vunpack.c.h.b16 %v108
    %v196 = vunpack.c.l.b16 %v109
    %v197 = vunpack.c.h.b16 %v109
    %v198 = vunpack.c.l.b16 %v110
    %v199 = vunpack.c.h.b16 %v110
    %v200 = vunpack.c.l.b16 %v111
    %v201 = vunpack.c.h.b16 %v111
    %v202 = vunpack.c.l.b16 %v112
    %v203 = vunpack.c.h.b16 %v112
    %v204 = vunpack.c.l.b16 %v113
    %v205 = vunpack.c.h.b16 %v113
    %v206 = vunpack.c.l.b16 %v114
    %v207 = vunpack.c.h.b16 %v114
    %v208 = vunpack.c.l.b16 %v115
    %v209 = vunpack.c.h.b16 %v115
    %v210 = vunpack.c.l.b16 %v116
    %v211 = vunpack.c.h.b16 %v116
    %v212 = vunpack.c.l.b16 %v117
    %v213 = vunpack.c.h.b16 %v117
    %v214 = vunpack.c.l.b16 %v118
    %v215 = vunpack.c.h.b16 %v118
    %v216 = vunpack.c.l.b16 %v119
    %v217 = vunpack.c.h.b16 %v119
    %v218 = vunpack.c.l.b16 %v120
    %v219 = vunpack.c.h.b16 %v120
    %v220 = vunpack.c.l.b16 %v121
    %v221 = vunpack.c.h.b16 %v121
    %v222 = vpack.c.b16 %v162, %v158
    %v223 = vpack.c.b16 %v163, %v159
    %v224 = vpack.c.b16 %v164, %v160
    %v225 = vpack.c.b16 %v165, %v161
    %v226 = vpack.c.b16 %v170, %v166
    %v227 = vpack.c.b16 %v171, %v167
    %v228 = vpack.c.b16 %v172, %v168
    %v229 = vpack.c.b16 %v173, %v169
    %v230 = vpack.c.b16 %v178, %v174
    %v231 = vpack.c.b16 %v179, %v175
    %v232 = vpack.c.b16 %v180, %v176
    %v233 = vpack.c.b16 %v181, %v177
    %v234 = vpack.c.b16 %v186, %v182
    %v235 = vpack.c.b16 %v187, %v183
    %v236 = vpack.c.b16 %v188, %v184
    %v237 = vpack.c.b16 %v189, %v185
    %v238 = vpack.c.b16 %v194, %v190
    %v239 = vpack.c.b16 %v195, %v191
    %v240 = vpack.c.b16 %v196, %v192
    %v241 = vpack.c.b16 %v197, %v193
    %v242 = vpack.c.b16 %v202, %v198
    %v243 = vpack.c.b16 %v203, %v199
    %v244 = vpack.c.b16 %v204, %v200
    %v245 = vpack.c.b16 %v205, %v201
    %v246 = vpack.c.b16 %v210, %v206
    %v247 = vpack.c.b16 %v211, %v207
    %v248 = vpack.c.b16 %v212, %v208
    %v249 = vpack.c.b16 %v213, %v209
    %v250 = vpack.c.b16 %v218, %v214
    %v251 = vpack.c.b16 %v219, %v215
    %v252 = vpack.c.b16 %v220, %v216
    %v253 = vpack.c.b16 %v221, %v217
    %286 = vmatprep.subr.bf16.mxu0 %v251
    %287 = vmatpush1.bf16.msra.mxu0 %v250
    %288 = vmatprep.subr.bf16.mxu0 %v247
    %289 = vmatpush1.bf16.msra.mxu0 %v246
    %290 = vmatprep.subr.bf16.mxu0 %v243
    %291 = vmatpush1.bf16.msra.mxu0 %v242
    %292 = vmatprep.subr.bf16.mxu0 %v239
    %293 = vmatpush1.bf16.msra.mxu0 %v238
    %294 = vmatprep.subr.bf16.mxu0 %v235
    %295 = vmatpush1.bf16.msra.mxu0 %v234
    %296 = vmatprep.subr.bf16.mxu0 %v231
    %297 = vmatpush1.bf16.msra.mxu0 %v230
    %298 = vmatprep.subr.bf16.mxu0 %v227
    %299 = vmatpush1.bf16.msra.mxu0 %v226
    %300 = vmatprep.subr.bf16.mxu0 %v223
    %301 = vmatpush1.bf16.msra.mxu0 %v222
    %302 = vmatprep.subr.bf16.mxu0 0
    %303 = vmatpush2.bf16.msra.mxu0 0
    %304 = vmatprep.subr.bf16.mxu0 0
    %305 = vmatpush2.bf16.msra.mxu0 0
    %306 = vmatprep.subr.bf16.mxu0 0
    %307 = vmatpush2.bf16.msra.mxu0 0
    %308 = vmatprep.subr.bf16.mxu0 0
    %309 = vmatpush2.bf16.msra.mxu0 0
    %310 = vmatprep.subr.bf16.mxu0 0
    %311 = vmatpush2.bf16.msra.mxu0 0
    %312 = vmatprep.subr.bf16.mxu0 0
    %313 = vmatpush2.bf16.msra.mxu0 0
    %314 = vmatprep.subr.bf16.mxu0 0
    %315 = vmatpush2.bf16.msra.mxu0 0
    %316 = vmatprep.subr.bf16.mxu0 0
    %317 = vmatpush2.bf16.msra.mxu0 0
    %318 = vmatprep.mubr.bf16.mxu0 0
    %319 = vmatmul.mubr.bf16.gmra.mxu0 %v125
    %v320 = vpop.f32.mrf.mxu0
    %v321 = vadd.f32 0.0, %v320
    %v322 = vpop.f32.mrf.mxu0
    %v323 = vadd.f32 0.0, %v322
    %v324 = vpop.f32.mrf.mxu0
    %v325 = vpop.f32.mrf.mxu0
    %326 = vdwg.mxu0
    %327 = vmatprep.subr.bf16.mxu0 %v253
    %328 = vmatpush1.bf16.msra.mxu0 %v252
    %329 = vmatprep.subr.bf16.mxu0 %v249
    %330 = vmatpush1.bf16.msra.mxu0 %v248
    %331 = vmatprep.subr.bf16.mxu0 %v245
    %332 = vmatpush1.bf16.msra.mxu0 %v244
    %333 = vmatprep.subr.bf16.mxu0 %v241
    %334 = vmatpush1.bf16.msra.mxu0 %v240
    %335 = vmatprep.subr.bf16.mxu0 %v237
    %336 = vmatpush1.bf16.msra.mxu0 %v236
    %337 = vmatprep.subr.bf16.mxu0 %v233
    %338 = vmatpush1.bf16.msra.mxu0 %v232
    %339 = vmatprep.subr.bf16.mxu0 %v229
    %340 = vmatpush1.bf16.msra.mxu0 %v228
    %341 = vmatprep.subr.bf16.mxu0 %v225
    %342 = vmatpush1.bf16.msra.mxu0 %v224
    %343 = vmatprep.subr.bf16.mxu0 0
    %344 = vmatpush2.bf16.msra.mxu0 0
    %345 = vmatprep.subr.bf16.mxu0 0
    %346 = vmatpush2.bf16.msra.mxu0 0
    %347 = vmatprep.subr.bf16.mxu0 0
    %348 = vmatpush2.bf16.msra.mxu0 0
    %349 = vmatprep.subr.bf16.mxu0 0
    %350 = vmatpush2.bf16.msra.mxu0 0
    %351 = vmatprep.subr.bf16.mxu0 0
    %352 = vmatpush2.bf16.msra.mxu0 0
    %353 = vmatprep.subr.bf16.mxu0 0
    %354 = vmatpush2.bf16.msra.mxu0 0
    %355 = vmatprep.subr.bf16.mxu0 0
    %356 = vmatpush2.bf16.msra.mxu0 0
    %357 = vmatprep.subr.bf16.mxu0 0
    %358 = vmatpush2.bf16.msra.mxu0 0
    %359 = vmatprep.mubr.bf16.mxu0 0
    %360 = vmatmul.mubr.bf16.gmra.mxu0 %v125
    %v361 = vpop.f32.mrf.mxu0
    %v362 = vadd.f32 0.0, %v361
    %v363 = vpop.f32.mrf.mxu0
    %v364 = vadd.f32 0.0, %v363
    %v365 = vpop.f32.mrf.mxu0
    %v366 = vpop.f32.mrf.mxu0
    %367 = vdwg.mxu0
    %v372 = vcombine.low %v321, %v323
    %v373 = vcombine.low %v362, %v364
    %v375 = vunpack.c.l.s4 1966171168
    %v376 = vunpack.c.0.s8 %v375
    %v377 = vlaneseq
    %v378 = vshrl.u32 %v377, 7
    %v379 = vsub.s32 %v376, %v378
    %v380 = vrot.slane %v372, %v379
    %v382 = vunpack.c.l.s4 1966171168
    %v383 = vunpack.c.0.s8 %v382
    %v384 = vlaneseq
    %v385 = vshrl.u32 %v384, 7
    %v386 = vsub.s32 %v383, %v385
    %v387 = vrot.slane %v373, %v386
    %v388 = vcombine.low %v380, %v387
    %v390 = vunpack.c.l.s4 1966171168
    %v391 = vunpack.c.0.s8 %v390
    %v392 = vlaneseq
    %v393 = vshrl.u32 %v392, 7
    %v394 = vsub.s32 %v391, %v393
    %v395 = vrot.slane %v388, %v394
    %v397 = vadd.f32 %v124, %v395
    %v398 = vxor.u32 %v397, 2147483648
    %v399 = vmul.f32 %v398, 1.442695
    %v400 = vpow.pop %v399
    %v401 = vadd.f32 %v400, 1.0
    %v402 = vrcp.pop %v401
    %v403 = vmul.f32 1.0, %v402
    %v405 = vrot.slane %v397, 1
    %v407 = vxor.u32 %v405, 2147483648
    %v408 = vmul.f32 %v407, 1.442695
    %v409 = vpow.pop %v408
    %v410 = vadd.f32 %v409, 1.0
    %v411 = vrcp.pop %v410
    %v412 = vmul.f32 1.0, %v411
    %v413 = vrot.slane %v397, 2
    %v415 = vtanh.pop %v413
    %v416 = vrot.slane %v397, 3
    %v418 = vxor.u32 %v416, 2147483648
    %v419 = vmul.f32 %v418, 1.442695
    %v420 = vpow.pop %v419
    %v421 = vadd.f32 %v420, 1.0
    %v422 = vrcp.pop %v421
    %v423 = vmul.f32 1.0, %v422
    %v424 = vmul.f32 %v412, %v123
    %v425 = vmul.f32 %v403, %v415
    %v426 = vadd.f32 %v424, %v425
    %v427 = vtanh.pop %v426
    %v428 = vmul.f32 %v423, %v427
    %429 = vst [vmem:[#allocation2] sm:$0x1] %v428
    %430 = vst [vmem:[#allocation14] sm:$0x1] %v428
    %431 = vst [vmem:[#allocation15] sm:$0x1] %v426
    %v432 = vld [vmem:[#allocation2] sm:$0x1]
    %v433 = vpack.c.bf16 %v432, %v432
    %v434 = vld [vmem:[#allocation9] sm:$0xff]
    %v435 = vld [vmem:[#allocation9 + $0x8] sm:$0xff]
    %v436 = vld [vmem:[#allocation9 + $0x10] sm:$0xff]
    %v437 = vld [vmem:[#allocation9 + $0x18] sm:$0xff]
    %v438 = vld [vmem:[#allocation9 + $0x20] sm:$0xff]
    %v439 = vld [vmem:[#allocation9 + $0x28] sm:$0xff]
    %v440 = vld [vmem:[#allocation9 + $0x30] sm:$0xff]
    %v441 = vld [vmem:[#allocation9 + $0x38] sm:$0xff]
    %v442 = vld [vmem:[#allocation9 + $0x40] sm:$0xff]
    %v443 = vld [vmem:[#allocation9 + $0x48] sm:$0xff]
    %v444 = vld [vmem:[#allocation9 + $0x50] sm:$0xff]
    %v445 = vld [vmem:[#allocation9 + $0x58] sm:$0xff]
    %v446 = vld [vmem:[#allocation9 + $0x60] sm:$0xff]
    %v447 = vld [vmem:[#allocation9 + $0x68] sm:$0xff]
    %v448 = vld [vmem:[#allocation9 + $0x70] sm:$0xff]
    %v449 = vld [vmem:[#allocation9 + $0x78] sm:$0xff]
    %v450 = vld [vmem:[%s5] sm:$0x3]
    %v467 = vunpack.c.l.b16 %v434
    %v468 = vunpack.c.h.b16 %v434
    %v469 = vunpack.c.l.b16 %v435
    %v470 = vunpack.c.h.b16 %v435
    %v471 = vunpack.c.l.b16 %v436
    %v472 = vunpack.c.h.b16 %v436
    %v473 = vunpack.c.l.b16 %v437
    %v474 = vunpack.c.h.b16 %v437
    %v475 = vunpack.c.l.b16 %v438
    %v476 = vunpack.c.h.b16 %v438
    %v477 = vunpack.c.l.b16 %v439
    %v478 = vunpack.c.h.b16 %v439
    %v479 = vunpack.c.l.b16 %v440
    %v480 = vunpack.c.h.b16 %v440
    %v481 = vunpack.c.l.b16 %v441
    %v482 = vunpack.c.h.b16 %v441
    %v483 = vunpack.c.l.b16 %v442
    %v484 = vunpack.c.h.b16 %v442
    %v485 = vunpack.c.l.b16 %v443
    %v486 = vunpack.c.h.b16 %v443
    %v487 = vunpack.c.l.b16 %v444
    %v488 = vunpack.c.h.b16 %v444
    %v489 = vunpack.c.l.b16 %v445
    %v490 = vunpack.c.h.b16 %v445
    %v491 = vunpack.c.l.b16 %v446
    %v492 = vunpack.c.h.b16 %v446
    %v493 = vunpack.c.l.b16 %v447
    %v494 = vunpack.c.h.b16 %v447
    %v495 = vunpack.c.l.b16 %v448
    %v496 = vunpack.c.h.b16 %v448
    %v497 = vunpack.c.l.b16 %v449
    %v498 = vunpack.c.h.b16 %v449
    %v499 = vpack.c.b16 %v469, %v467
    %v500 = vpack.c.b16 %v470, %v468
    %v501 = vpack.c.b16 %v473, %v471
    %v502 = vpack.c.b16 %v474, %v472
    %v503 = vpack.c.b16 %v477, %v475
    %v504 = vpack.c.b16 %v478, %v476
    %v505 = vpack.c.b16 %v481, %v479
    %v506 = vpack.c.b16 %v482, %v480
    %v507 = vpack.c.b16 %v485, %v483
    %v508 = vpack.c.b16 %v486, %v484
    %v509 = vpack.c.b16 %v489, %v487
    %v510 = vpack.c.b16 %v490, %v488
    %v511 = vpack.c.b16 %v493, %v491
    %v512 = vpack.c.b16 %v494, %v492
    %v513 = vpack.c.b16 %v497, %v495
    %v514 = vpack.c.b16 %v498, %v496
    %v532 = vlaneseq
    %v533 = vshrl.u32 %v532, 7
    %v534 = vsub.s32 0, %v533
    %v535 = vrot.slane %v450, %v534
    %v536 = vlaneseq
    %v537 = vshrl.u32 %v536, 7
    %v538 = vsub.s32 1, %v537
    %v539 = vrot.slane %v450, %v538
    %542 = vmatprep.subr.bf16.mxu0 %v514
    %543 = vmatpush1.bf16.msra.mxu0 %v513
    %544 = vmatprep.subr.bf16.mxu0 %v512
    %545 = vmatpush1.bf16.msra.mxu0 %v511
    %546 = vmatprep.subr.bf16.mxu0 %v510
    %547 = vmatpush1.bf16.msra.mxu0 %v509
    %548 = vmatprep.subr.bf16.mxu0 %v508
    %549 = vmatpush1.bf16.msra.mxu0 %v507
    %550 = vmatprep.subr.bf16.mxu0 %v506
    %551 = vmatpush1.bf16.msra.mxu0 %v505
    %552 = vmatprep.subr.bf16.mxu0 %v504
    %553 = vmatpush1.bf16.msra.mxu0 %v503
    %554 = vmatprep.subr.bf16.mxu0 %v502
    %555 = vmatpush1.bf16.msra.mxu0 %v501
    %556 = vmatprep.subr.bf16.mxu0 %v500
    %557 = vmatpush1.bf16.msra.mxu0 %v499
    %558 = vmatprep.subr.bf16.mxu0 0
    %559 = vmatpush2.bf16.msra.mxu0 0
    %560 = vmatprep.subr.bf16.mxu0 0
    %561 = vmatpush2.bf16.msra.mxu0 0
    %562 = vmatprep.subr.bf16.mxu0 0
    %563 = vmatpush2.bf16.msra.mxu0 0
    %564 = vmatprep.subr.bf16.mxu0 0
    %565 = vmatpush2.bf16.msra.mxu0 0
    %566 = vmatprep.subr.bf16.mxu0 0
    %567 = vmatpush2.bf16.msra.mxu0 0
    %568 = vmatprep.subr.bf16.mxu0 0
    %569 = vmatpush2.bf16.msra.mxu0 0
    %570 = vmatprep.subr.bf16.mxu0 0
    %571 = vmatpush2.bf16.msra.mxu0 0
    %572 = vmatprep.subr.bf16.mxu0 0
    %573 = vmatpush2.bf16.msra.mxu0 0
    %574 = vmatprep.mubr.bf16.mxu0 0
    %575 = vmatmul.mubr.bf16.gmra.mxu0 %v433
    %v576 = vpop.f32.mrf.mxu0
    %v577 = vadd.f32 %v535, %v576
    %v578 = vpop.f32.mrf.mxu0
    %v579 = vadd.f32 %v539, %v578
    %v580 = vpop.f32.mrf.mxu0
    %v581 = vpop.f32.mrf.mxu0
    %582 = vdwg.mxu0
    %vm583 = vcmask 1040384
    %v584 = vsel %vm583, %v577, -inf
    %v585 = vsel %vm583, %v579, -inf
    %v586 = vmax.f32 %v584, %v585
    %587 = vmax.xlane.f32.xlu0 %v586
    %v588 = vpop.xlane.xlu0 %587
    %v589 = vsub.f32 %v577, %v588
    %v590 = vsub.f32 %v579, %v588
    %v591 = vmul.f32 %v589, 1.442695
    %v592 = vpow.pop %v591
    %v593 = vmul.f32 %v590, 1.442695
    %v594 = vpow.pop %v593
    %v595 = vsel %vm583, %v592, 0.0
    %v596 = vsel %vm583, %v594, 0.0
    %v597 = vadd.f32 %v595, %v596
    %598 = vadd.xlane.f32.xlu0 %v597
    %v599 = vpop.xlane.xlu0 %598
    %v600 = vlog2.pop %v599
    %v601 = vmul.f32 %v600, 0.6931472
    %v602 = vadd.f32 %v588, %v601
    %v605 = vcombine.low %v577, %v579
    %v607 = vunpack.c.l.s4 1966171168
    %v608 = vunpack.c.0.s8 %v607
    %v609 = vlaneseq
    %v610 = vshrl.u32 %v609, 7
    %v611 = vsub.s32 %v608, %v610
    %v612 = vrot.slane %v605, %v611
    %v614 = vunpack.c.l.s4 1966171168
    %v615 = vunpack.c.0.s8 %v614
    %v616 = vlaneseq
    %v617 = vshrl.u32 %v616, 7
    %v618 = vsub.s32 %v615, %v617
    %v619 = vrot.slane %v612, %v618
    %v621 = vlaneseq
    %vm622 = vcmp.ge.s32.totalorder %v621, 0
    %vm623 = vcmp.lt.s32.totalorder %v621, 256
    %vm624 = vmand %vm622, %vm623
    %625 = vst.msk [vmem:[#allocation11] sm:$0x3] %vm624, %v619
    %vm626 = vcmask 0
    %627 = vst.msk [vmem:[#allocation12] sm:$0x1] %vm626, %v602
    // Predicated region
    $region46: #{tpu_custom_call.1} parent=1 // pred_check
      _
    $region47: #{tpu_custom_call.1} parent=1 // pred_check_branch
      %629 = sbr.rel (0) target = $region49
    $region48: #{tpu_custom_call.1} parent=1 // pred_region
      %s631 = ssub.s32 32, 32
      %632 = vsyncadd [#allocation5], %s631
      %s634 = sshll.u32 [#allocation11], 4
      %s635 = int_to_ptr.vmem [resolvable:$true] %s634
      %637 = dma.vmem_to_hbm [thread:$0]  %s635, 32, %s6, [#allocation5]
    $region49: #{tpu_custom_call.1} parent=1 // pred_fallthru
      _
    // Predicated region
    $region50: #{tpu_custom_call.1} parent=1 // pred_check
      _
    $region51: #{tpu_custom_call.1} parent=1 // pred_check_branch
      %639 = sbr.rel (0) target = $region53
    $region52: #{tpu_custom_call.1} parent=1 // pred_region
      %s641 = ssub.s32 16, 16
      %642 = vsyncadd [#allocation13], %s641
      %s644 = sshll.u32 [#allocation12], 4
      %s645 = int_to_ptr.vmem [resolvable:$true] %s644
      %647 = dma.vmem_to_hbm [thread:$0]  %s645, 16, %s7, [#allocation13]
    $region53: #{tpu_custom_call.1} parent=1 // pred_fallthru
      _
    // Predicated region
    $region54: #{tpu_custom_call.1} parent=1 // pred_check
      _
    $region55: #{tpu_custom_call.1} parent=1 // pred_check_branch
      %649 = sbr.rel (0) target = $region57
    $region56: #{tpu_custom_call.1} parent=1 // pred_region
      %s651 = ssub.s32 16, 16
      %652 = vsyncadd [#allocation13], %s651
      %s654 = sshll.u32 [#allocation14], 4
      %s655 = int_to_ptr.vmem [resolvable:$true] %s654
      %657 = dma.vmem_to_hbm [thread:$0]  %s655, 16, %s8, [#allocation13]
    $region57: #{tpu_custom_call.1} parent=1 // pred_fallthru
      _
    // Predicated region
    $region58: #{tpu_custom_call.1} parent=1 // pred_check
      _
    $region59: #{tpu_custom_call.1} parent=1 // pred_check_branch
      %659 = sbr.rel (0) target = $region61
    $region60: #{tpu_custom_call.1} parent=1 // pred_region
      %s661 = ssub.s32 16, 16
      %662 = vsyncadd [#allocation16], %s661
      %s664 = sshll.u32 [#allocation15], 4
      %s665 = int_to_ptr.vmem [resolvable:$true] %s664
      %667 = dma.vmem_to_hbm [thread:$0]  %s665, 16, %s9, [#allocation16]
    $region61: #{tpu_custom_call.1} parent=1 // pred_fallthru
      _
    // Predicated region
    $region62: #{tpu_custom_call.1} parent=1 // pred_check
      _
    $region63: #{tpu_custom_call.1} parent=1 // pred_check_branch
      %669 = sbr.rel (0) target = $region65
    $region64: #{tpu_custom_call.1} parent=1 // pred_region
      %670 = dma.done [#allocation5], 32
    $region65: #{tpu_custom_call.1} parent=1 // pred_fallthru
      _
    // Predicated region
    $region66: #{tpu_custom_call.1} parent=1 // pred_check
      _
    $region67: #{tpu_custom_call.1} parent=1 // pred_check_branch
      %672 = sbr.rel (0) target = $region69
    $region68: #{tpu_custom_call.1} parent=1 // pred_region
      %673 = dma.done [#allocation13], 16
    $region69: #{tpu_custom_call.1} parent=1 // pred_fallthru
      _
    // Predicated region
    $region70: #{tpu_custom_call.1} parent=1 // pred_check
      _
    $region71: #{tpu_custom_call.1} parent=1 // pred_check_branch
      %675 = sbr.rel (0) target = $region73
    $region72: #{tpu_custom_call.1} parent=1 // pred_region
      %676 = dma.done [#allocation13], 16
    $region73: #{tpu_custom_call.1} parent=1 // pred_fallthru
      _
    // Predicated region
    $region74: #{tpu_custom_call.1} parent=1 // pred_check
      _
    $region75: #{tpu_custom_call.1} parent=1 // pred_check_branch
      %678 = sbr.rel (0) target = $region77
    $region76: #{tpu_custom_call.1} parent=1 // pred_region
      %679 = dma.done [#allocation16], 16
    $region77: #{tpu_custom_call.1} parent=1 // pred_fallthru
      _
    %680 = vsyncpa [#allocation4], 1
    %681 = vsyncpa [#allocation7], 1
    %682 = vsyncpa [#allocation10], 1
    %683 = vsyncpa [#allocation5], 1
    %684 = vsyncpa [#allocation13], 1
    %685 = vsyncpa [#allocation16], 1

</llo_original>
